<compile_context>
chip_gen: v5e
topology: v5e:2x2
jax: 0.10.0
libtpu: 0.0.40
codegen_flags: <defaults>
</compile_context>

<pallas_src>
import functools

import jax
import jax.numpy as jnp
from jax.experimental import pallas as pl
from jax.experimental.pallas import tpu as pltpu


def _soft_sigmoid_kernel(z_ref, o_ref, *, gamma, beta, alpha, approx):
    # Whole hot path in-kernel: exp (EUP), lane-reduction (XLU), reciprocal,
    # sigmoid. Compute in f32 regardless of storage dtype.
    z = z_ref[...].astype(jnp.float32)
    exp_z = jnp.exp(gamma * z)
    denom = exp_z.sum(axis=-1, keepdims=True)           # reduce over last dim (lanes)
    z_softmax = exp_z * pl.reciprocal(denom, approx=approx)
    out = pl.reciprocal(1.0 + jnp.exp(-beta * (z_softmax - alpha)), approx=approx)
    o_ref[...] = out.astype(o_ref.dtype)


def _pick_row_tile(B, F, itemsize, mult):
    """Pick a row tile: ~2 MiB input block, bounded by VMEM budget and batch."""
    row_bytes = max(F * itemsize, 1)
    # ~2 MiB per input block keeps the DMA engine near HBM roofline.
    target = (2 << 20) // row_bytes
    # Keep double-buffered (in + out) residency <= ~16 MiB -> fits v5e/v6e
    # scoped defaults and leaves ample headroom inside v7x's 64 MiB VMEM.
    cap = (16 << 20) // (4 * row_bytes)
    rt = min(target, cap)
    # Never exceed the (sublane-padded) batch.
    rt = min(rt, ((B + mult - 1) // mult) * mult)
    # Keep >= ~8 grid steps on large batches so megacore sharding and
    # double-buffered DMA overlap stay fed.
    if B >= 8 * mult:
        rt = min(rt, -(-B // 8))
    rt = max(mult, (rt // mult) * mult)
    return rt


def soft_sigmoid(z, gamma: float = 1.0, beta: float = 1.0, alpha: float = 0.0,
                 *, row_tile: int | None = None, use_approx_recip: bool = False):
    """Pallas TPU implementation of SoftSigmoid.forward (softmax over last axis)."""
    orig_shape = z.shape
    if z.ndim == 1:
        z2 = z.reshape(1, -1)
    elif z.ndim == 2:
        z2 = z
    else:
        z2 = z.reshape(-1, orig_shape[-1])

    B, F = z2.shape
    itemsize = jnp.dtype(z2.dtype).itemsize
    # Sublane-packing multiple: 8 for 32-bit, 16 for 16-bit, 32 for 8-bit dtypes.
    mult = {4: 8, 2: 16, 1: 32}.get(itemsize, 8)

    if row_tile is None:
        row_tile = _pick_row_tile(B, F, itemsize, mult)
    row_tile = max(mult, (row_tile // mult) * mult)

    # Pad the batch up to the tile (zero rows are safe: exp(0)=1, finite softmax).
    B_pad = ((B + row_tile - 1) // row_tile) * row_tile
    z_in = z2 if B_pad == B else jnp.pad(z2, ((0, B_pad - B), (0, 0)))

    grid = (B_pad // row_tile,)
    block_bytes = row_tile * F * itemsize
    # 2 double-buffered blocks each for input and output, plus headroom.
    vmem_limit = int(4 * block_bytes * 1.5) + (2 << 20)
    vmem_limit = max(8 << 20, min(vmem_limit, 48 << 20))

    kernel = functools.partial(
        _soft_sigmoid_kernel, gamma=float(gamma), beta=float(beta),
        alpha=float(alpha), approx=use_approx_recip,
    )

    out = pl.pallas_call(
        kernel,
        out_shape=jax.ShapeDtypeStruct((B_pad, F), z2.dtype),
        grid_spec=pltpu.PrefetchScalarGridSpec(
            num_scalar_prefetch=0,
            grid=grid,
            in_specs=[pl.BlockSpec((row_tile, F), lambda i: (i, 0))],
            out_specs=pl.BlockSpec((row_tile, F), lambda i: (i, 0)),
        ),
        compiler_params=pltpu.CompilerParams(
            dimension_semantics=("parallel",),
            vmem_limit_bytes=vmem_limit,
        ),
        cost_estimate=pl.CostEstimate(
            flops=6 * B_pad * F,
            transcendentals=2 * B_pad * F,
            bytes_accessed=2 * B_pad * F * itemsize,
        ),
    )(z_in)

    if B_pad != B:
        out = out[:B]
    return out.reshape(orig_shape)


def soft_sigmoid_ref(z, gamma=1.0, beta=1.0, alpha=0.0):
    # Pure-JAX reference mirroring the torch forward exactly.
    exp_z = jnp.exp(gamma * z)
    z_softmax = exp_z / exp_z.sum(axis=-1, keepdims=True)
    return 1.0 / (1.0 + jnp.exp(-beta * (z_softmax - alpha)))


if __name__ == "__main__":
    key = jax.random.PRNGKey(0)
    k0, k1, k2 = jax.random.split(key, 3)

    gamma, beta, alpha = 1.0, 1.0, 0.0   # module defaults (no learned params)

    # Small shape consistent with the module: (batch, hidden).
    B, F = 16, 128
    z = jax.random.normal(k0, (B, F), dtype=jnp.float32)
    out = jax.block_until_ready(soft_sigmoid(z, gamma, beta, alpha))
    ref = soft_sigmoid_ref(z, gamma, beta, alpha)
    assert out.shape == z.shape and out.dtype == z.dtype
    assert jnp.max(jnp.abs(out - ref)) < 1e-5

    # Ragged batch (exercises the pad-to-tile + slice path).
    z2 = jax.random.normal(k1, (10, F), dtype=jnp.float32)
    out2 = jax.block_until_ready(soft_sigmoid(z2, gamma, beta, alpha))
    ref2 = soft_sigmoid_ref(z2, gamma, beta, alpha)
    assert out2.shape == z2.shape
    assert jnp.max(jnp.abs(out2 - ref2)) < 1e-5

    # N-D input (softmax over the last axis), non-default gamma/beta/alpha.
    z3 = jax.random.normal(k2, (2, 6, 32), dtype=jnp.float32)
    out3 = jax.block_until_ready(soft_sigmoid(z3, 2.0, 0.5, 0.1))
    ref3 = soft_sigmoid_ref(z3, 2.0, 0.5, 0.1)
    assert out3.shape == z3.shape
    assert jnp.max(jnp.abs(out3 - ref3)) < 1e-5

    print("KERNEL_OK")
</pallas_src>

<mosaic_0001>
module attributes {stable_mosaic.version = 11 : i64} {
  func.func @_soft_sigmoid_kernel(%arg0: i32, %arg1: memref<16x128xf32, #tpu.memory_space<vmem>>, %arg2: memref<16x128xf32, #tpu.memory_space<vmem>>) attributes {dimension_semantics = [#tpu.dimension_semantics<parallel>], iteration_bounds = array<i64: 1>, scalar_prefetch = 0 : i64, scratch_operands = 0 : i64, tpu.core_type = #tpu.core_type<tc>, window_params = [{transform_indices = @transform_0, window_bounds = array<i64: 16, 128>}, {transform_indices = @transform_1, window_bounds = array<i64: 16, 128>}]} {
    %c0 = arith.constant 0 : index
    %c0_0 = arith.constant 0 : index
    %0 = vector.load %arg1[%c0, %c0_0] : memref<16x128xf32, #tpu.memory_space<vmem>>, vector<16x128xf32>
    %cst = arith.constant 1.000000e+00 : f32
    %1 = vector.broadcast %cst : f32 to vector<16x128xf32>
    %2 = arith.mulf %1, %0 : vector<16x128xf32>
    %3 = math.exp %2 : vector<16x128xf32>
    %cst_1 = arith.constant dense<0.000000e+00> : vector<16xf32>
    %4 = vector.multi_reduction <add>, %3, %cst_1 [1] : vector<16x128xf32> to vector<16xf32>
    %5 = vector.shape_cast %4 : vector<16xf32> to vector<16x1xf32>
    %6 = tpu.reciprocal %5 : vector<16x1xf32> -> vector<16x1xf32>
    %7 = vector.broadcast %6 : vector<16x1xf32> to vector<16x128xf32>
    %8 = arith.mulf %3, %7 : vector<16x128xf32>
    %cst_2 = arith.constant 0.000000e+00 : f32
    %9 = vector.broadcast %cst_2 : f32 to vector<16x128xf32>
    %10 = arith.subf %8, %9 : vector<16x128xf32>
    %cst_3 = arith.constant -1.000000e+00 : f32
    %11 = vector.broadcast %cst_3 : f32 to vector<16x128xf32>
    %12 = arith.mulf %11, %10 : vector<16x128xf32>
    %13 = math.exp %12 : vector<16x128xf32>
    %cst_4 = arith.constant 1.000000e+00 : f32
    %14 = vector.broadcast %cst_4 : f32 to vector<16x128xf32>
    %15 = arith.addf %14, %13 : vector<16x128xf32>
    %16 = tpu.reciprocal %15 : vector<16x128xf32> -> vector<16x128xf32>
    %c0_5 = arith.constant 0 : index
    %c0_6 = arith.constant 0 : index
    %17 = vector.load %arg2[%c0_5, %c0_6] : memref<16x128xf32, #tpu.memory_space<vmem>>, vector<16x128xf32>
    tpu.vector_store %arg2[%c0_5, %c0_6], %16 {strides = array<i32>} : memref<16x128xf32, #tpu.memory_space<vmem>>, vector<16x128xf32>,
    return
  }
  func.func @transform_0(%arg0: i32) -> (i32, i32) {
    %c0_i32 = arith.constant 0 : i32
    %c0_i32_0 = arith.constant 0 : i32
    return %arg0, %c0_i32 : i32, i32
  }
  func.func @transform_1(%arg0: i32) -> (i32, i32) {
    %c0_i32 = arith.constant 0 : i32
    %c0_i32_0 = arith.constant 0 : i32
    return %arg0, %c0_i32 : i32, i32
  }
}

</mosaic_0001>

<llo_original>
// kernel: tpu_custom_call.1
$region0: #{tpu_custom_call.1}
  #allocation0 [shape = 'u32[]', space=smem, size = 0x4, offset = 0x4, fixed_abs, tag = 'smem constant byte address 0x4 - core index']
  #allocation1 [shape = 'u32[72,128]{1,0:T(1,128)}', space=vmem, size = 0x9000, scoped, tag = 'internal scratch']
  %s0 = inlined_call_operand.hbm [shape: f32[16,128], index: 0, kind: input, shape index: {}]
  %s1 = inlined_call_operand.hbm [shape: f32[16,128], index: 1, kind: output, shape index: {}]
  %s2 = sld [smem:[#allocation0]]
  $region18: #{tpu_custom_call.1} parent=0
    _
  %s4 = ssub.s32 1, %s2
  %s5 = scalar_select 0, %s4, %s2
  $region1: #{tpu_custom_call.1} parent=0
    #allocation2 [shape = 'u8[8192]{0}', space=vmem, size = 0x2000, scoped, tag = 'input window, operand 0, single buffered']
    #allocation3 [shape = 's32[1]{0}', space=sflag, size = 0x4, scoped, tag = 'scoped memory for tpu_custom_call.1']
    #allocation4 [shape = 's32[1]{0}', space=sflag, size = 0x4, scoped, tag = 'scoped memory for tpu_custom_call.1']
    #allocation5 [shape = 'u8[8192]{0}', space=vmem, size = 0x2000, scoped, tag = 'output window, operand 0, single buffered']
    %6 = vsyncpa [#allocation3], 0
    %7 = vsyncpa [#allocation4], 0
    // Predicated region
    $region2: #{tpu_custom_call.1} parent=1 // pred_check
      _
    $region3: #{tpu_custom_call.1} parent=1 // pred_check_branch
      %9 = sbr.rel (0) target = $region5
    $region4: #{tpu_custom_call.1} parent=1 // pred_region
      %11 = vsyncadd [#allocation3], 0
      %s12 = sshll.u32 %s0, 4
      %s13 = int_to_ptr.hbm [resolvable:$true] %s12
      %s14 = sshll.u32 [#allocation2], 4
      %s15 = int_to_ptr.vmem [resolvable:$true] %s14
      %20 = dma.hbm_to_vmem [thread:$0]  %s13, 256, %s15, [#allocation3], 128, 128, 8
    $region5: #{tpu_custom_call.1} parent=1 // pred_fallthru
      _
    // Predicated region
    $region6: #{tpu_custom_call.1} parent=1 // pred_check
      _
    $region7: #{tpu_custom_call.1} parent=1 // pred_check_branch
      %22 = sbr.rel (0) target = $region9
    $region8: #{tpu_custom_call.1} parent=1 // pred_region
      %24 = dma.done [#allocation3], 256
    $region9: #{tpu_custom_call.1} parent=1 // pred_fallthru
      _
    %v25 = vld [vmem:[#allocation2] sm:$0xff]
    %v26 = vld [vmem:[#allocation2 + $0x8] sm:$0xff]
    %v27 = vmul.f32 %v25, 1.442695
    %v28 = vpow.pop %v27
    %v29 = vmul.f32 %v26, 1.442695
    %v30 = vpow.pop %v29
    %31 = vadd.xlane.f32.xlu0 %v28
    %v32 = vpop.xlane.xlu0 %31
    %33 = vadd.xlane.f32.xlu0 %v30
    %v34 = vpop.xlane.xlu0 %33
    %v35 = vrcp.pop %v32
    %v36 = vmul.f32 %v32, %v35
    %v37 = vsub.f32 1.0, %v36
    %v38 = vmul.f32 %v35, %v37
    %v39 = vadd.f32 %v35, %v38
    %vm40 = vweird.f32 %v32
    %vm41 = vweird.f32 %v35
    %vm42 = vmor %vm40, %vm41
    %v43 = vsel %vm42, %v35, %v39
    %v44 = vand.u32 2147483647, %v32
    %vm45 = vcmp.eq.f32.partialorder %v44, 8.507059e+37
    %v46 = vand.u32 %v32, 2147483648
    %v47 = vor.u32 1.1754944e-38, %v46
    %v48 = vsel %vm45, %v47, %v43
    %v49 = vrcp.pop %v34
    %v50 = vmul.f32 %v34, %v49
    %v51 = vsub.f32 1.0, %v50
    %v52 = vmul.f32 %v49, %v51
    %v53 = vadd.f32 %v49, %v52
    %vm54 = vweird.f32 %v34
    %vm55 = vweird.f32 %v49
    %vm56 = vmor %vm54, %vm55
    %v57 = vsel %vm56, %v49, %v53
    %v58 = vand.u32 2147483647, %v34
    %vm59 = vcmp.eq.f32.partialorder %v58, 8.507059e+37
    %v60 = vand.u32 %v34, 2147483648
    %v61 = vor.u32 1.1754944e-38, %v60
    %v62 = vsel %vm59, %v61, %v57
    %v63 = vmul.f32 %v28, %v48
    %v64 = vmul.f32 %v30, %v62
    %v65 = vmul.f32 %v63, -1.0
    %v66 = vmul.f32 %v64, -1.0
    %v67 = vmul.f32 %v65, 1.442695
    %v68 = vpow.pop %v67
    %v69 = vmul.f32 %v66, 1.442695
    %v70 = vpow.pop %v69
    %v71 = vadd.f32 %v68, 1.0
    %v72 = vadd.f32 %v70, 1.0
    %v73 = vrcp.pop %v71
    %v74 = vmul.f32 %v71, %v73
    %v75 = vsub.f32 1.0, %v74
    %v76 = vmul.f32 %v73, %v75
    %v77 = vadd.f32 %v73, %v76
    %vm78 = vweird.f32 %v71
    %vm79 = vweird.f32 %v73
    %vm80 = vmor %vm78, %vm79
    %v81 = vsel %vm80, %v73, %v77
    %v82 = vand.u32 2147483647, %v71
    %vm83 = vcmp.eq.f32.partialorder %v82, 8.507059e+37
    %v84 = vand.u32 %v71, 2147483648
    %v85 = vor.u32 1.1754944e-38, %v84
    %v86 = vsel %vm83, %v85, %v81
    %v87 = vrcp.pop %v72
    %v88 = vmul.f32 %v72, %v87
    %v89 = vsub.f32 1.0, %v88
    %v90 = vmul.f32 %v87, %v89
    %v91 = vadd.f32 %v87, %v90
    %vm92 = vweird.f32 %v72
    %vm93 = vweird.f32 %v87
    %vm94 = vmor %vm92, %vm93
    %v95 = vsel %vm94, %v87, %v91
    %v96 = vand.u32 2147483647, %v72
    %vm97 = vcmp.eq.f32.partialorder %v96, 8.507059e+37
    %v98 = vand.u32 %v72, 2147483648
    %v99 = vor.u32 1.1754944e-38, %v98
    %v100 = vsel %vm97, %v99, %v95
    %101 = vst [vmem:[#allocation5] sm:$0xff] %v86
    %102 = vst [vmem:[#allocation5 + $0x8] sm:$0xff] %v100
    // Predicated region
    $region10: #{tpu_custom_call.1} parent=1 // pred_check
      _
    $region11: #{tpu_custom_call.1} parent=1 // pred_check_branch
      %104 = sbr.rel (0) target = $region13
    $region12: #{tpu_custom_call.1} parent=1 // pred_region
      %106 = vsyncadd [#allocation4], 0
      %s107 = sshll.u32 [#allocation5], 4
      %s108 = int_to_ptr.vmem [resolvable:$true] %s107
      %s109 = sshll.u32 %s1, 4
      %s110 = int_to_ptr.hbm [resolvable:$true] %s109
      %115 = dma.vmem_to_hbm [thread:$0]  %s108, 256, %s110, [#allocation4], 128, 128, 8
    $region13: #{tpu_custom_call.1} parent=1 // pred_fallthru
      _
    // Predicated region
    $region14: #{tpu_custom_call.1} parent=1 // pred_check
      _
    $region15: #{tpu_custom_call.1} parent=1 // pred_check_branch
      %117 = sbr.rel (0) target = $region17
    $region16: #{tpu_custom_call.1} parent=1 // pred_region
      %119 = dma.done [#allocation4], 256
    $region17: #{tpu_custom_call.1} parent=1 // pred_fallthru
      _
    %120 = vsyncpa [#allocation3], 1
    %121 = vsyncpa [#allocation4], 1

</llo_original>
